<compile_context>
chip_gen: v6e
topology: v6e:2x2x1
jax: 0.10.0
libtpu: 0.0.40
codegen_flags: <defaults>
</compile_context>

<pallas_src>
import jax
import jax.numpy as jnp
from jax.experimental import pallas as pl
from jax.experimental.pallas import tpu as pltpu

LANE = 128  # TPU lane width; all channel dims are zero-padded to this.


# ----------------------------- Pallas kernel -------------------------------

def _make_fused_kernel(num_layers, cp):
    """Fused RelCNN forward: all RelConv layers + final linear in one kernel."""

    def kernel(*refs):
        x_ref, a_ref = refs[0], refs[1]
        layer_refs = refs[2:2 + 2 * num_layers]          # (Wpacked, bias) pairs
        wf_ref = refs[2 + 2 * num_layers]
        bf_ref = refs[3 + 2 * num_layers]
        o_ref = refs[4 + 2 * num_layers]

        a = a_ref[...]                                   # (N, N) mean-agg matrix
        h = x_ref[...]                                   # (N, CP) padded activations

        # Final linear expressed as a running accumulation over the `cat`
        # blocks (no materialised concat; activations stay in VMEM/vregs).
        acc = (jnp.dot(h, wf_ref[0:cp, :], preferred_element_type=jnp.float32)
               + bf_ref[...])

        for l in range(num_layers):                      # static unroll (L is tiny)
            wp = layer_refs[2 * l][...]                  # (2*CP, CP) = [Wr ; W1]
            bp = layer_refs[2 * l + 1][...]              # (1, CP)
            # Reassociated aggregation: the O(N^2) matmul contracts over CP once.
            y = jnp.dot(a, h, preferred_element_type=jnp.float32)     # (N, CP)
            z = jnp.concatenate([h, y], axis=-1)         # lane-aligned (128) concat
            h = jnp.maximum(
                jnp.dot(z, wp, preferred_element_type=jnp.float32) + bp, 0.0)
            # TODO(synk): dropout(p=0.5) omitted (inference mode).
            acc = acc + jnp.dot(h, wf_ref[(l + 1) * cp:(l + 2) * cp, :],
                                preferred_element_type=jnp.float32)

        o_ref[...] = acc                                 # lane-dense (N, CP) store

    return kernel


def _vmem_spec():
    # Whole-array VMEM blocks: this fused path targets graphs that fit in VMEM.
    return pl.BlockSpec(memory_space=pltpu.MemorySpace.VMEM)


def _cost_estimate(n, cp, num_layers):
    flops = 2 * n * cp * cp                                  # x0 block of final linear
    flops += num_layers * (2 * n * n * cp                    # A @ h
                           + 2 * n * (2 * cp) * cp           # [h|A@h] @ [Wr;W1]
                           + 2 * n * cp * cp)                # final-linear accumulation
    bytes_accessed = 4 * (n * cp + n * n                     # x, A
                          + num_layers * (2 * cp * cp + cp)  # packed layer weights
                          + (num_layers + 1) * cp * cp + cp  # final weights + bias
                          + n * cp)                          # output
    return pl.CostEstimate(flops=flops, transcendentals=0,
                           bytes_accessed=bytes_accessed)


def relcnn_fused(x_pad, a, layers, wf_pad, bf_pad, *, num_layers):
    n, cp = x_pad.shape
    args = [x_pad, a]
    for wp, bp in layers:
        args += [wp, bp]
    args += [wf_pad, bf_pad]
    return pl.pallas_call(
        _make_fused_kernel(num_layers, cp),
        out_shape=jax.ShapeDtypeStruct((n, cp), jnp.float32),
        in_specs=[_vmem_spec()] * len(args),
        out_specs=_vmem_spec(),
        cost_estimate=_cost_estimate(n, cp, num_layers),
    )(*args)


# ------------------------------- JAX glue ----------------------------------

def build_agg_matrix(edge_index, num_nodes):
    """Dense mean-aggregation matrix A = A1 + A2 (single scatter; A2 uses A1^T).

    A1[i, s] = (#edges s->i) / max(in_deg(i), 1)    (flow source_to_target)
    A2[i, t] = (#edges i->t) / max(out_deg(i), 1)   (flow target_to_source)
    """
    src, dst = edge_index[0], edge_index[1]
    ones = jnp.ones(src.shape[0], jnp.float32)
    cnt = jnp.zeros((num_nodes, num_nodes), jnp.float32).at[dst, src].add(ones)
    a1 = cnt / jnp.maximum(cnt.sum(axis=1, keepdims=True), 1.0)
    cnt_t = cnt.T                         # cnt_t[s, d] = #edges s->d
    a2 = cnt_t / jnp.maximum(cnt_t.sum(axis=1, keepdims=True), 1.0)
    return a1 + a2


def init_linear(key, fan_in, fan_out, bias=True):
    # Mimics torch.nn.Linear.reset_parameters bounds: U(-1/sqrt(fan_in), ...)
    kw, kb = jax.random.split(key)
    bound = 1.0 / float(fan_in) ** 0.5
    w = jax.random.uniform(kw, (fan_in, fan_out), jnp.float32, -bound, bound)
    if bias:
        b = jax.random.uniform(kb, (1, fan_out), jnp.float32, -bound, bound)
        return w, b
    return w, None


def init_graphc_params(key, input_dim, output_dim, num_layers):
    params = {"convs": []}
    c_in = input_dim
    keys = jax.random.split(key, num_layers + 1)
    for layer in range(num_layers):
        k1, k2, kr = jax.random.split(keys[layer], 3)
        w1, _ = init_linear(k1, c_in, output_dim, bias=False)
        w2, _ = init_linear(k2, c_in, output_dim, bias=False)  # lin2: unused on edge_weight path
        wr, br = init_linear(kr, c_in, output_dim, bias=True)
        params["convs"].append({"w1": w1, "w2": w2, "wr": wr, "br": br})
        c_in = output_dim
    cat_dim = input_dim + num_layers * output_dim               # cat=True
    wf, bf = init_linear(keys[-1], cat_dim, output_dim, bias=True)
    params["final"] = {"w": wf, "b": bf}
    return params


def pack_params_padded(params, input_dim, output_dim, num_layers, cp=LANE):
    """Zero-pad and pack weights so every kernel matmul is 128-lane dense."""
    layers = []
    c_in = input_dim
    for conv in params["convs"]:
        wp = jnp.zeros((2 * cp, cp), jnp.float32)
        wp = wp.at[0:c_in, 0:output_dim].set(conv["wr"])          # root proj
        wp = wp.at[cp:cp + c_in, 0:output_dim].set(conv["w1"])    # neighbour proj
        bp = jnp.zeros((1, cp), jnp.float32).at[:, 0:output_dim].set(conv["br"])
        layers.append((wp, bp))
        c_in = output_dim
    wf = params["final"]["w"]                                     # (cat_dim, out)
    wf_pad = jnp.zeros(((num_layers + 1) * cp, cp), jnp.float32)
    wf_pad = wf_pad.at[0:input_dim, 0:output_dim].set(wf[0:input_dim])
    off = input_dim
    for l in range(num_layers):
        wf_pad = wf_pad.at[(l + 1) * cp:(l + 1) * cp + output_dim,
                           0:output_dim].set(wf[off:off + output_dim])
        off += output_dim
    bf_pad = jnp.zeros((1, cp), jnp.float32).at[:, 0:output_dim].set(
        params["final"]["b"])
    return {"layers": layers, "wf": wf_pad, "bf": bf_pad}


def graphc_forward(packed_params, x, edge_index, edge_weight, *,
                   output_dim, num_layers):
    # edge_weight is gathered into `norm` in PyTorch but never consumed by
    # message(x_j) -> it does not affect the output; kept for signature fidelity.
    del edge_weight
    n = x.shape[0]
    if 4 * n * n > 24 * 1024 * 1024:
        # TODO(synk): row-tiled / sparse-gather aggregation path for large graphs.
        raise NotImplementedError("dense-A fused path requires the graph to fit in VMEM")
    a = build_agg_matrix(edge_index, n)
    x_pad = jnp.zeros((n, LANE), jnp.float32).at[:, :x.shape[1]].set(x)
    out_pad = relcnn_fused(x_pad, a, packed_params["layers"],
                           packed_params["wf"], packed_params["bf"],
                           num_layers=num_layers)
    return out_pad[:, :output_dim]


def _reference_forward(params, x, edge_index):
    """Pure-JAX reference (unpadded, unfused) for a correctness check."""
    hi = jax.lax.Precision.HIGHEST
    n = x.shape[0]
    a = build_agg_matrix(edge_index, n)
    xs = [x]
    for conv in params["convs"]:
        h = jnp.maximum(
            jnp.dot(xs[-1], conv["wr"], precision=hi) + conv["br"]
            + jnp.dot(a, jnp.dot(xs[-1], conv["w1"], precision=hi), precision=hi),
            0.0)
        xs.append(h)
    xc = jnp.concatenate(xs, axis=-1)
    return jnp.dot(xc, params["final"]["w"], precision=hi) + params["final"]["b"]


# --------------------------------- main -------------------------------------

if __name__ == "__main__":
    input_dim, output_dim, num_layers = 8, 32, 2
    num_nodes, num_edges = 16, 48

    key = jax.random.PRNGKey(0)
    k_param, k_x, k_e, k_w = jax.random.split(key, 4)

    params = init_graphc_params(k_param, input_dim, output_dim, num_layers)
    packed = pack_params_padded(params, input_dim, output_dim, num_layers)

    x = jax.random.normal(k_x, (num_nodes, input_dim), jnp.float32)
    edge_index = jax.random.randint(k_e, (2, num_edges), 0, num_nodes, jnp.int32)
    edge_weight = jax.random.uniform(k_w, (num_nodes, num_nodes), jnp.float32)

    out = graphc_forward(packed, x, edge_index, edge_weight,
                         output_dim=output_dim, num_layers=num_layers)
    out = jax.block_until_ready(out)
    assert out.shape == (num_nodes, output_dim), out.shape

    ref = jax.block_until_ready(_reference_forward(params, x, edge_index))
    assert jnp.allclose(out, ref, rtol=1e-2, atol=1e-2), \
        float(jnp.max(jnp.abs(out - ref)))

    print("KERNEL_OK")
</pallas_src>

<mosaic_0001>
module attributes {stable_mosaic.version = 11 : i64} {
  func.func @kernel(%arg0: memref<16x128xf32, #tpu.memory_space<vmem>>, %arg1: memref<16x16xf32, #tpu.memory_space<vmem>>, %arg2: memref<256x128xf32, #tpu.memory_space<vmem>>, %arg3: memref<1x128xf32, #tpu.memory_space<vmem>>, %arg4: memref<256x128xf32, #tpu.memory_space<vmem>>, %arg5: memref<1x128xf32, #tpu.memory_space<vmem>>, %arg6: memref<384x128xf32, #tpu.memory_space<vmem>>, %arg7: memref<1x128xf32, #tpu.memory_space<vmem>>, %arg8: memref<16x128xf32, #tpu.memory_space<vmem>>) attributes {dimension_semantics = [], scalar_prefetch = 0 : i64, scratch_operands = 0 : i64, tpu.core_type = #tpu.core_type<tc>} {
    %c0 = arith.constant 0 : index
    %c0_0 = arith.constant 0 : index
    %0 = vector.load %arg1[%c0, %c0_0] : memref<16x16xf32, #tpu.memory_space<vmem>>, vector<16x16xf32>
    %c0_1 = arith.constant 0 : index
    %c0_2 = arith.constant 0 : index
    %1 = vector.load %arg0[%c0_1, %c0_2] : memref<16x128xf32, #tpu.memory_space<vmem>>, vector<16x128xf32>
    %c0_3 = arith.constant 0 : index
    %c0_4 = arith.constant 0 : index
    %2 = vector.load %arg6[%c0_3, %c0_4] : memref<384x128xf32, #tpu.memory_space<vmem>>, vector<128x128xf32>
    %cst = arith.constant dense<0.000000e+00> : vector<16x128xf32>
    %3 = tpu.matmul %1, %2, %cst {dimension_numbers = #tpu.dot_dimension_numbers<[1], [0], [0], [1], [0, 0, 1, 1], [], []>} : vector<16x128xf32>, vector<128x128xf32>, vector<16x128xf32> -> vector<16x128xf32>
    %c0_5 = arith.constant 0 : index
    %c0_6 = arith.constant 0 : index
    %4 = vector.load %arg7[%c0_5, %c0_6] : memref<1x128xf32, #tpu.memory_space<vmem>>, vector<1x128xf32>
    %5 = vector.broadcast %4 : vector<1x128xf32> to vector<16x128xf32>
    %6 = arith.addf %3, %5 : vector<16x128xf32>
    %c0_7 = arith.constant 0 : index
    %c0_8 = arith.constant 0 : index
    %7 = vector.load %arg2[%c0_7, %c0_8] : memref<256x128xf32, #tpu.memory_space<vmem>>, vector<256x128xf32>
    %c0_9 = arith.constant 0 : index
    %c0_10 = arith.constant 0 : index
    %8 = vector.load %arg3[%c0_9, %c0_10] : memref<1x128xf32, #tpu.memory_space<vmem>>, vector<1x128xf32>
    %cst_11 = arith.constant dense<0.000000e+00> : vector<16x128xf32>
    %9 = tpu.matmul %0, %1, %cst_11 {dimension_numbers = #tpu.dot_dimension_numbers<[1], [0], [0], [1], [0, 0, 1, 1], [], []>} : vector<16x16xf32>, vector<16x128xf32>, vector<16x128xf32> -> vector<16x128xf32>
    %10 = tpu.concatenate %1, %9 in 1 : vector<16x128xf32>, vector<16x128xf32> -> vector<16x256xf32>
    %cst_12 = arith.constant dense<0.000000e+00> : vector<16x128xf32>
    %11 = tpu.matmul %10, %7, %cst_12 {dimension_numbers = #tpu.dot_dimension_numbers<[1], [0], [0], [1], [0, 0, 1, 1], [], []>} : vector<16x256xf32>, vector<256x128xf32>, vector<16x128xf32> -> vector<16x128xf32>
    %12 = vector.broadcast %8 : vector<1x128xf32> to vector<16x128xf32>
    %13 = arith.addf %11, %12 : vector<16x128xf32>
    %cst_13 = arith.constant 0.000000e+00 : f32
    %14 = vector.broadcast %cst_13 : f32 to vector<16x128xf32>
    %15 = arith.maximumf %13, %14 : vector<16x128xf32>
    %c128 = arith.constant 128 : index
    %c0_14 = arith.constant 0 : index
    %16 = vector.load %arg6[%c128, %c0_14] : memref<384x128xf32, #tpu.memory_space<vmem>>, vector<128x128xf32>
    %cst_15 = arith.constant dense<0.000000e+00> : vector<16x128xf32>
    %17 = tpu.matmul %15, %16, %cst_15 {dimension_numbers = #tpu.dot_dimension_numbers<[1], [0], [0], [1], [0, 0, 1, 1], [], []>} : vector<16x128xf32>, vector<128x128xf32>, vector<16x128xf32> -> vector<16x128xf32>
    %18 = arith.addf %6, %17 : vector<16x128xf32>
    %c0_16 = arith.constant 0 : index
    %c0_17 = arith.constant 0 : index
    %19 = vector.load %arg4[%c0_16, %c0_17] : memref<256x128xf32, #tpu.memory_space<vmem>>, vector<256x128xf32>
    %c0_18 = arith.constant 0 : index
    %c0_19 = arith.constant 0 : index
    %20 = vector.load %arg5[%c0_18, %c0_19] : memref<1x128xf32, #tpu.memory_space<vmem>>, vector<1x128xf32>
    %cst_20 = arith.constant dense<0.000000e+00> : vector<16x128xf32>
    %21 = tpu.matmul %0, %15, %cst_20 {dimension_numbers = #tpu.dot_dimension_numbers<[1], [0], [0], [1], [0, 0, 1, 1], [], []>} : vector<16x16xf32>, vector<16x128xf32>, vector<16x128xf32> -> vector<16x128xf32>
    %22 = tpu.concatenate %15, %21 in 1 : vector<16x128xf32>, vector<16x128xf32> -> vector<16x256xf32>
    %cst_21 = arith.constant dense<0.000000e+00> : vector<16x128xf32>
    %23 = tpu.matmul %22, %19, %cst_21 {dimension_numbers = #tpu.dot_dimension_numbers<[1], [0], [0], [1], [0, 0, 1, 1], [], []>} : vector<16x256xf32>, vector<256x128xf32>, vector<16x128xf32> -> vector<16x128xf32>
    %24 = vector.broadcast %20 : vector<1x128xf32> to vector<16x128xf32>
    %25 = arith.addf %23, %24 : vector<16x128xf32>
    %cst_22 = arith.constant 0.000000e+00 : f32
    %26 = vector.broadcast %cst_22 : f32 to vector<16x128xf32>
    %27 = arith.maximumf %25, %26 : vector<16x128xf32>
    %c256 = arith.constant 256 : index
    %c0_23 = arith.constant 0 : index
    %28 = vector.load %arg6[%c256, %c0_23] : memref<384x128xf32, #tpu.memory_space<vmem>>, vector<128x128xf32>
    %cst_24 = arith.constant dense<0.000000e+00> : vector<16x128xf32>
    %29 = tpu.matmul %27, %28, %cst_24 {dimension_numbers = #tpu.dot_dimension_numbers<[1], [0], [0], [1], [0, 0, 1, 1], [], []>} : vector<16x128xf32>, vector<128x128xf32>, vector<16x128xf32> -> vector<16x128xf32>
    %30 = arith.addf %18, %29 : vector<16x128xf32>
    %c0_25 = arith.constant 0 : index
    %c0_26 = arith.constant 0 : index
    %31 = vector.load %arg8[%c0_25, %c0_26] : memref<16x128xf32, #tpu.memory_space<vmem>>, vector<16x128xf32>
    tpu.vector_store %arg8[%c0_25, %c0_26], %30 {strides = array<i32>} : memref<16x128xf32, #tpu.memory_space<vmem>>, vector<16x128xf32>,
    return
  }
}

</mosaic_0001>

<llo_original>
// kernel: tpu_custom_call.1
$region0: #{tpu_custom_call.1}
  #allocation0 [shape = 'u32[]', space=smem, size = 0x4, offset = 0x4, fixed_abs, tag = 'smem constant byte address 0x4 - core index']
  #allocation1 [shape = 'u32[144,128]{1,0:T(1,128)}', space=vmem, size = 0x12000, scoped, tag = 'internal scratch']
  %s0 = inlined_call_operand.hbm [shape: f32[16,128], index: 0, kind: input, shape index: {}]
  %s1 = inlined_call_operand.hbm [shape: f32[16,16], index: 1, kind: input, shape index: {}]
  %s2 = inlined_call_operand.hbm [shape: f32[256,128], index: 2, kind: input, shape index: {}]
  %s3 = inlined_call_operand.vmem [shape: f32[1,128], index: 3, kind: input, shape index: {}]
  %s4 = inlined_call_operand.hbm [shape: f32[256,128], index: 4, kind: input, shape index: {}]
  %s5 = inlined_call_operand.vmem [shape: f32[1,128], index: 5, kind: input, shape index: {}]
  %s6 = inlined_call_operand.hbm [shape: f32[384,128], index: 6, kind: input, shape index: {}]
  %s7 = inlined_call_operand.vmem [shape: f32[1,128], index: 7, kind: input, shape index: {}]
  %s8 = inlined_call_operand.hbm [shape: f32[16,128], index: 8, kind: output, shape index: {}]
  %s9 = sld [smem:[#allocation0]]
  $region62: #{tpu_custom_call.1} parent=0
    _
  %s11 = ssub.s32 1, %s9
  %s12 = scalar_select 0, %s11, %s9
  $region1: #{tpu_custom_call.1} parent=0
    #allocation2 [shape = 'u8[8192]{0}', space=vmem, size = 0x2000, scoped, tag = 'input window, operand 0, single buffered']
    #allocation3 [shape = 's32[1]{0}', space=sflag, size = 0x4, scoped, tag = 'scoped memory for tpu_custom_call.1']
    #allocation4 [shape = 's32[1]{0}', space=sflag, size = 0x4, scoped, tag = 'scoped memory for tpu_custom_call.1']
    #allocation5 [shape = 'u8[8192]{0}', space=vmem, size = 0x2000, scoped, tag = 'input window, operand 1, single buffered']
    #allocation6 [shape = 's32[1]{0}', space=sflag, size = 0x4, scoped, tag = 'scoped memory for tpu_custom_call.1']
    #allocation7 [shape = 'u8[131072]{0}', space=vmem, size = 0x20000, scoped, tag = 'input window, operand 2, single buffered']
    #allocation8 [shape = 'u8[131072]{0}', space=vmem, size = 0x20000, scoped, tag = 'input window, operand 4, single buffered']
    #allocation9 [shape = 's32[1]{0}', space=sflag, size = 0x4, scoped, tag = 'scoped memory for tpu_custom_call.1']
    #allocation10 [shape = 'u8[196608]{0}', space=vmem, size = 0x30000, scoped, tag = 'input window, operand 6, single buffered']
    #allocation11 [shape = 'u8[8192]{0}', space=vmem, size = 0x2000, scoped, tag = 'output window, operand 0, single buffered']
    %13 = vsyncpa [#allocation3], 0
    %14 = vsyncpa [#allocation6], 0
    %15 = vsyncpa [#allocation9], 0
    %16 = vsyncpa [#allocation4], 0
    // Predicated region
    $region2: #{tpu_custom_call.1} parent=1 // pred_check
      _
    $region3: #{tpu_custom_call.1} parent=1 // pred_check_branch
      %18 = sbr.rel (0) target = $region5
    $region4: #{tpu_custom_call.1} parent=1 // pred_region
      %s20 = ssub.s32 256, 256
      %21 = vsyncadd [#allocation3], %s20
      %s22 = sshll.u32 [#allocation2], 4
      %s23 = int_to_ptr.vmem [resolvable:$true] %s22
      %28 = dma.hbm_to_vmem [thread:$0]  %s0, 256, %s23, [#allocation3], 128, 128, 8
    $region5: #{tpu_custom_call.1} parent=1 // pred_fallthru
      _
    // Predicated region
    $region6: #{tpu_custom_call.1} parent=1 // pred_check
      _
    $region7: #{tpu_custom_call.1} parent=1 // pred_check_branch
      %30 = sbr.rel (0) target = $region9
    $region8: #{tpu_custom_call.1} parent=1 // pred_region
      %s32 = ssub.s32 256, 256
      %33 = vsyncadd [#allocation6], %s32
      %s34 = sshll.u32 [#allocation5], 4
      %s35 = int_to_ptr.vmem [resolvable:$true] %s34
      %40 = dma.hbm_to_vmem [thread:$0]  %s1, 256, %s35, [#allocation6], 128, 128, 8
    $region9: #{tpu_custom_call.1} parent=1 // pred_fallthru
      _
    // Predicated region
    $region10: #{tpu_custom_call.1} parent=1 // pred_check
      _
    $region11: #{tpu_custom_call.1} parent=1 // pred_check_branch
      %42 = sbr.rel (0) target = $region13
    $region12: #{tpu_custom_call.1} parent=1 // pred_region
      %s44 = ssub.s32 4096, 4096
      %45 = vsyncadd [#allocation6], %s44
      %s46 = sshll.u32 [#allocation7], 4
      %s47 = int_to_ptr.vmem [resolvable:$true] %s46
      %52 = dma.hbm_to_vmem [thread:$0]  %s2, 4096, %s47, [#allocation6], 128, 128, 8
    $region13: #{tpu_custom_call.1} parent=1 // pred_fallthru
      _
    // Predicated region
    $region14: #{tpu_custom_call.1} parent=1 // pred_check
      _
    $region15: #{tpu_custom_call.1} parent=1 // pred_check_branch
      %54 = sbr.rel (0) target = $region17
    $region16: #{tpu_custom_call.1} parent=1 // pred_region
      _
    $region17: #{tpu_custom_call.1} parent=1 // pred_fallthru
      _
    // Predicated region
    $region18: #{tpu_custom_call.1} parent=1 // pred_check
      _
    $region19: #{tpu_custom_call.1} parent=1 // pred_check_branch
      %56 = sbr.rel (0) target = $region21
    $region20: #{tpu_custom_call.1} parent=1 // pred_region
      %s58 = ssub.s32 4096, 4096
      %59 = vsyncadd [#allocation9], %s58
      %s60 = sshll.u32 [#allocation8], 4
      %s61 = int_to_ptr.vmem [resolvable:$true] %s60
      %66 = dma.hbm_to_vmem [thread:$0]  %s4, 4096, %s61, [#allocation9], 128, 128, 8
    $region21: #{tpu_custom_call.1} parent=1 // pred_fallthru
      _
    // Predicated region
    $region22: #{tpu_custom_call.1} parent=1 // pred_check
      _
    $region23: #{tpu_custom_call.1} parent=1 // pred_check_branch
      %68 = sbr.rel (0) target = $region25
    $region24: #{tpu_custom_call.1} parent=1 // pred_region
      _
    $region25: #{tpu_custom_call.1} parent=1 // pred_fallthru
      _
    // Predicated region
    $region26: #{tpu_custom_call.1} parent=1 // pred_check
      _
    $region27: #{tpu_custom_call.1} parent=1 // pred_check_branch
      %70 = sbr.rel (0) target = $region29
    $region28: #{tpu_custom_call.1} parent=1 // pred_region
      %s72 = ssub.s32 6144, 6144
      %73 = vsyncadd [#allocation9], %s72
      %s74 = sshll.u32 [#allocation10], 4
      %s75 = int_to_ptr.vmem [resolvable:$true] %s74
      %80 = dma.hbm_to_vmem [thread:$0]  %s6, 6144, %s75, [#allocation9], 128, 128, 8
    $region29: #{tpu_custom_call.1} parent=1 // pred_fallthru
      _
    // Predicated region
    $region30: #{tpu_custom_call.1} parent=1 // pred_check
      _
    $region31: #{tpu_custom_call.1} parent=1 // pred_check_branch
      %82 = sbr.rel (0) target = $region33
    $region32: #{tpu_custom_call.1} parent=1 // pred_region
      _
    $region33: #{tpu_custom_call.1} parent=1 // pred_fallthru
      _
    // Predicated region
    $region34: #{tpu_custom_call.1} parent=1 // pred_check
      _
    $region35: #{tpu_custom_call.1} parent=1 // pred_check_branch
      %84 = sbr.rel (0) target = $region37
    $region36: #{tpu_custom_call.1} parent=1 // pred_region
      %85 = dma.done [#allocation3], 256
    $region37: #{tpu_custom_call.1} parent=1 // pred_fallthru
      _
    // Predicated region
    $region38: #{tpu_custom_call.1} parent=1 // pred_check
      _
    $region39: #{tpu_custom_call.1} parent=1 // pred_check_branch
      %87 = sbr.rel (0) target = $region41
    $region40: #{tpu_custom_call.1} parent=1 // pred_region
      %88 = dma.done [#allocation6], 256
    $region41: #{tpu_custom_call.1} parent=1 // pred_fallthru
      _
    // Predicated region
    $region42: #{tpu_custom_call.1} parent=1 // pred_check
      _
    $region43: #{tpu_custom_call.1} parent=1 // pred_check_branch
      %90 = sbr.rel (0) target = $region45
    $region44: #{tpu_custom_call.1} parent=1 // pred_region
      %91 = dma.done [#allocation6], 4096
    $region45: #{tpu_custom_call.1} parent=1 // pred_fallthru
      _
    // Predicated region
    $region46: #{tpu_custom_call.1} parent=1 // pred_check
      _
    $region47: #{tpu_custom_call.1} parent=1 // pred_check_branch
      %93 = sbr.rel (0) target = $region49
    $region48: #{tpu_custom_call.1} parent=1 // pred_region
      %94 = dma.done [#allocation9], 4096
    $region49: #{tpu_custom_call.1} parent=1 // pred_fallthru
      _
    // Predicated region
    $region50: #{tpu_custom_call.1} parent=1 // pred_check
      _
    $region51: #{tpu_custom_call.1} parent=1 // pred_check_branch
      %96 = sbr.rel (0) target = $region53
    $region52: #{tpu_custom_call.1} parent=1 // pred_region
      %97 = dma.done [#allocation9], 6144
    $region53: #{tpu_custom_call.1} parent=1 // pred_fallthru
      _
    %v98 = vld [vmem:[#allocation5] sm:$0xff]
    %v99 = vld [vmem:[#allocation5 + $0x8] sm:$0xff]
    %v100 = vld [vmem:[#allocation2] sm:$0xff]
    %v101 = vld [vmem:[#allocation2 + $0x8] sm:$0xff]
    %v102 = vld [vmem:[#allocation10] sm:$0xff]
    %v103 = vld [vmem:[#allocation10 + $0x8] sm:$0xff]
    %v104 = vld [vmem:[#allocation10 + $0x10] sm:$0xff]
    %v105 = vld [vmem:[#allocation10 + $0x18] sm:$0xff]
    %v106 = vld [vmem:[#allocation10 + $0x20] sm:$0xff]
    %v107 = vld [vmem:[#allocation10 + $0x28] sm:$0xff]
    %v108 = vld [vmem:[#allocation10 + $0x30] sm:$0xff]
    %v109 = vld [vmem:[#allocation10 + $0x38] sm:$0xff]
    %v110 = vld [vmem:[#allocation10 + $0x40] sm:$0xff]
    %v111 = vld [vmem:[#allocation10 + $0x48] sm:$0xff]
    %v112 = vld [vmem:[#allocation10 + $0x50] sm:$0xff]
    %v113 = vld [vmem:[#allocation10 + $0x58] sm:$0xff]
    %v114 = vld [vmem:[#allocation10 + $0x60] sm:$0xff]
    %v115 = vld [vmem:[#allocation10 + $0x68] sm:$0xff]
    %v116 = vld [vmem:[#allocation10 + $0x70] sm:$0xff]
    %v117 = vld [vmem:[#allocation10 + $0x78] sm:$0xff]
    %v118 = vld [vmem:[%s7] sm:$0x1]
    %v120 = vlaneseq
    %v121 = vshrl.u32 %v120, 7
    %v122 = vsub.s32 0, %v121
    %v123 = vrot.slane %v118, %v122
    %125 = vmatprep.subr.mxu0 0.0
    %126 = vmatpush1.msra.mxu0 %v117
    %127 = vmatprep.subr.mxu0 0.0
    %128 = vmatpush1.msra.mxu0 %v116
    %129 = vmatprep.subr.mxu0 0.0
    %130 = vmatpush1.msra.mxu0 %v115
    %131 = vmatprep.subr.mxu0 0.0
    %132 = vmatpush1.msra.mxu0 %v114
    %133 = vmatprep.subr.mxu0 0.0
    %134 = vmatpush1.msra.mxu0 %v113
    %135 = vmatprep.subr.mxu0 0.0
    %136 = vmatpush1.msra.mxu0 %v112
    %137 = vmatprep.subr.mxu0 0.0
    %138 = vmatpush1.msra.mxu0 %v111
    %139 = vmatprep.subr.mxu0 0.0
    %140 = vmatpush1.msra.mxu0 %v110
    %141 = vmatprep.subr.mxu0 0.0
    %142 = vmatpush1.msra.mxu0 %v109
    %143 = vmatprep.subr.mxu0 0.0
    %144 = vmatpush1.msra.mxu0 %v108
    %145 = vmatprep.subr.mxu0 0.0
    %146 = vmatpush1.msra.mxu0 %v107
    %147 = vmatprep.subr.mxu0 0.0
    %148 = vmatpush1.msra.mxu0 %v106
    %149 = vmatprep.subr.mxu0 0.0
    %150 = vmatpush1.msra.mxu0 %v105
    %151 = vmatprep.subr.mxu0 0.0
    %152 = vmatpush1.msra.mxu0 %v104
    %153 = vmatprep.subr.mxu0 0.0
    %154 = vmatpush1.msra.mxu0 %v103
    %155 = vmatprep.subr.mxu0 0.0
    %156 = vmatpush1.msra.mxu0 %v102
    %157 = vmatprep.subr.mxu0 0.0
    %158 = vmatpush2.msra.mxu0 0.0
    %159 = vmatprep.subr.mxu0 0.0
    %160 = vmatpush2.msra.mxu0 0.0
    %161 = vmatprep.subr.mxu0 0.0
    %162 = vmatpush2.msra.mxu0 0.0
    %163 = vmatprep.subr.mxu0 0.0
    %164 = vmatpush2.msra.mxu0 0.0
    %165 = vmatprep.subr.mxu0 0.0
    %166 = vmatpush2.msra.mxu0 0.0
    %167 = vmatprep.subr.mxu0 0.0
    %168 = vmatpush2.msra.mxu0 0.0
    %169 = vmatprep.subr.mxu0 0.0
    %170 = vmatpush2.msra.mxu0 0.0
    %171 = vmatprep.subr.mxu0 0.0
    %172 = vmatpush2.msra.mxu0 0.0
    %173 = vmatprep.subr.mxu0 0.0
    %174 = vmatpush2.msra.mxu0 0.0
    %175 = vmatprep.subr.mxu0 0.0
    %176 = vmatpush2.msra.mxu0 0.0
    %177 = vmatprep.subr.mxu0 0.0
    %178 = vmatpush2.msra.mxu0 0.0
    %179 = vmatprep.subr.mxu0 0.0
    %180 = vmatpush2.msra.mxu0 0.0
    %181 = vmatprep.subr.mxu0 0.0
    %182 = vmatpush2.msra.mxu0 0.0
    %183 = vmatprep.subr.mxu0 0.0
    %184 = vmatpush2.msra.mxu0 0.0
    %185 = vmatprep.subr.mxu0 0.0
    %186 = vmatpush2.msra.mxu0 0.0
    %187 = vmatprep.subr.mxu0 0.0
    %188 = vmatpush2.msra.mxu0 0.0
    %189 = vmatprep.mubr.f32.mxu0 0.0
    %190 = vmatmul.mubr.f32.gmra.mxu0 %v100
    %v191 = vpop.f32.mrf.mxu0
    %v192 = vadd.f32 %v123, %v191
    %v193 = vpop.f32.mrf.mxu0
    %194 = vmatprep.mubr.f32.mxu0 0.0
    %195 = vmatmul.mubr.f32.gmra.mxu0 %v101
    %v196 = vpop.f32.mrf.mxu0
    %v197 = vadd.f32 %v123, %v196
    %v198 = vpop.f32.mrf.mxu0
    %199 = vdwg.mxu0
    %v200 = vld [vmem:[#allocation7] sm:$0xff]
    %v201 = vld [vmem:[#allocation7 + $0x8] sm:$0xff]
    %v202 = vld [vmem:[#allocation7 + $0x10] sm:$0xff]
    %v203 = vld [vmem:[#allocation7 + $0x18] sm:$0xff]
    %v204 = vld [vmem:[#allocation7 + $0x20] sm:$0xff]
    %v205 = vld [vmem:[#allocation7 + $0x28] sm:$0xff]
    %v206 = vld [vmem:[#allocation7 + $0x30] sm:$0xff]
    %v207 = vld [vmem:[#allocation7 + $0x38] sm:$0xff]
    %v208 = vld [vmem:[#allocation7 + $0x40] sm:$0xff]
    %v209 = vld [vmem:[#allocation7 + $0x48] sm:$0xff]
    %v210 = vld [vmem:[#allocation7 + $0x50] sm:$0xff]
    %v211 = vld [vmem:[#allocation7 + $0x58] sm:$0xff]
    %v212 = vld [vmem:[#allocation7 + $0x60] sm:$0xff]
    %v213 = vld [vmem:[#allocation7 + $0x68] sm:$0xff]
    %v214 = vld [vmem:[#allocation7 + $0x70] sm:$0xff]
    %v215 = vld [vmem:[#allocation7 + $0x78] sm:$0xff]
    %v216 = vld [vmem:[#allocation7 + $0x80] sm:$0xff]
    %v217 = vld [vmem:[#allocation7 + $0x88] sm:$0xff]
    %v218 = vld [vmem:[#allocation7 + $0x90] sm:$0xff]
    %v219 = vld [vmem:[#allocation7 + $0x98] sm:$0xff]
    %v220 = vld [vmem:[#allocation7 + $0xa0] sm:$0xff]
    %v221 = vld [vmem:[#allocation7 + $0xa8] sm:$0xff]
    %v222 = vld [vmem:[#allocation7 + $0xb0] sm:$0xff]
    %v223 = vld [vmem:[#allocation7 + $0xb8] sm:$0xff]
    %v224 = vld [vmem:[#allocation7 + $0xc0] sm:$0xff]
    %v225 = vld [vmem:[#allocation7 + $0xc8] sm:$0xff]
    %v226 = vld [vmem:[#allocation7 + $0xd0] sm:$0xff]
    %v227 = vld [vmem:[#allocation7 + $0xd8] sm:$0xff]
    %v228 = vld [vmem:[#allocation7 + $0xe0] sm:$0xff]
    %v229 = vld [vmem:[#allocation7 + $0xe8] sm:$0xff]
    %v230 = vld [vmem:[#allocation7 + $0xf0] sm:$0xff]
    %v231 = vld [vmem:[#allocation7 + $0xf8] sm:$0xff]
    %v232 = vld [vmem:[%s3] sm:$0x1]
    %vm233 = vcmask 130048
    %v235 = vsel %vm233, %v98, 0
    %v238 = vsel %vm233, %v99, 0
    %240 = vmatprep.subr.mxu0 0.0
    %241 = vmatpush1.msra.mxu0 0.0
    %242 = vmatprep.subr.mxu0 0.0
    %243 = vmatpush1.msra.mxu0 0.0
    %244 = vmatprep.subr.mxu0 0.0
    %245 = vmatpush1.msra.mxu0 0.0
    %246 = vmatprep.subr.mxu0 0.0
    %247 = vmatpush1.msra.mxu0 0.0
    %248 = vmatprep.subr.mxu0 0.0
    %249 = vmatpush1.msra.mxu0 0.0
    %250 = vmatprep.subr.mxu0 0.0
    %251 = vmatpush1.msra.mxu0 0.0
    %252 = vmatprep.subr.mxu0 0.0
    %253 = vmatpush1.msra.mxu0 0.0
    %254 = vmatprep.subr.mxu0 0.0
    %255 = vmatpush1.msra.mxu0 0.0
    %256 = vmatprep.subr.mxu0 0.0
    %257 = vmatpush1.msra.mxu0 0.0
    %258 = vmatprep.subr.mxu0 0.0
    %259 = vmatpush1.msra.mxu0 0.0
    %260 = vmatprep.subr.mxu0 0.0
    %261 = vmatpush1.msra.mxu0 0.0
    %262 = vmatprep.subr.mxu0 0.0
    %263 = vmatpush1.msra.mxu0 0.0
    %264 = vmatprep.subr.mxu0 0.0
    %265 = vmatpush1.msra.mxu0 0.0
    %266 = vmatprep.subr.mxu0 0.0
    %267 = vmatpush1.msra.mxu0 0.0
    %268 = vmatprep.subr.mxu0 0.0
    %269 = vmatpush1.msra.mxu0 %v101
    %270 = vmatprep.subr.mxu0 0.0
    %271 = vmatpush1.msra.mxu0 %v100
    %272 = vmatprep.subr.mxu0 0.0
    %273 = vmatpush2.msra.mxu0 0.0
    %274 = vmatprep.subr.mxu0 0.0
    %275 = vmatpush2.msra.mxu0 0.0
    %276 = vmatprep.subr.mxu0 0.0
    %277 = vmatpush2.msra.mxu0 0.0
    %278 = vmatprep.subr.mxu0 0.0
    %279 = vmatpush2.msra.mxu0 0.0
    %280 = vmatprep.subr.mxu0 0.0
    %281 = vmatpush2.msra.mxu0 0.0
    %282 = vmatprep.subr.mxu0 0.0
    %283 = vmatpush2.msra.mxu0 0.0
    %284 = vmatprep.subr.mxu0 0.0
    %285 = vmatpush2.msra.mxu0 0.0
    %286 = vmatprep.subr.mxu0 0.0
    %287 = vmatpush2.msra.mxu0 0.0
    %288 = vmatprep.subr.mxu0 0.0
    %289 = vmatpush2.msra.mxu0 0.0
    %290 = vmatprep.subr.mxu0 0.0
    %291 = vmatpush2.msra.mxu0 0.0
    %292 = vmatprep.subr.mxu0 0.0
    %293 = vmatpush2.msra.mxu0 0.0
    %294 = vmatprep.subr.mxu0 0.0
    %295 = vmatpush2.msra.mxu0 0.0
    %296 = vmatprep.subr.mxu0 0.0
    %297 = vmatpush2.msra.mxu0 0.0
    %298 = vmatprep.subr.mxu0 0.0
    %299 = vmatpush2.msra.mxu0 0.0
    %300 = vmatprep.subr.mxu0 0.0
    %301 = vmatpush2.msra.mxu0 0.0
    %302 = vmatprep.subr.mxu0 0.0
    %303 = vmatpush2.msra.mxu0 0.0
    %304 = vmatprep.mubr.f32.mxu0 0.0
    %305 = vmatmul.mubr.f32.gmra.mxu0 %v235
    %v306 = vpop.f32.mrf.mxu0
    %v307 = vadd.f32 0.0, %v306
    %v308 = vpop.f32.mrf.mxu0
    %309 = vmatprep.mubr.f32.mxu0 0.0
    %310 = vmatmul.mubr.f32.gmra.mxu0 %v238
    %v311 = vpop.f32.mrf.mxu0
    %v312 = vadd.f32 0.0, %v311
    %v313 = vpop.f32.mrf.mxu0
    %314 = vdwg.mxu0
    %v316 = vlaneseq
    %v317 = vshrl.u32 %v316, 7
    %v318 = vsub.s32 0, %v317
    %v319 = vrot.slane %v232, %v318
    %321 = vmatprep.subr.mxu0 0.0
    %322 = vmatpush1.msra.mxu0 %v215
    %323 = vmatprep.subr.mxu0 0.0
    %324 = vmatpush1.msra.mxu0 %v214
    %325 = vmatprep.subr.mxu0 0.0
    %326 = vmatpush1.msra.mxu0 %v213
    %327 = vmatprep.subr.mxu0 0.0
    %328 = vmatpush1.msra.mxu0 %v212
    %329 = vmatprep.subr.mxu0 0.0
    %330 = vmatpush1.msra.mxu0 %v211
    %331 = vmatprep.subr.mxu0 0.0
    %332 = vmatpush1.msra.mxu0 %v210
    %333 = vmatprep.subr.mxu0 0.0
    %334 = vmatpush1.msra.mxu0 %v209
    %335 = vmatprep.subr.mxu0 0.0
    %336 = vmatpush1.msra.mxu0 %v208
    %337 = vmatprep.subr.mxu0 0.0
    %338 = vmatpush1.msra.mxu0 %v207
    %339 = vmatprep.subr.mxu0 0.0
    %340 = vmatpush1.msra.mxu0 %v206
    %341 = vmatprep.subr.mxu0 0.0
    %342 = vmatpush1.msra.mxu0 %v205
    %343 = vmatprep.subr.mxu0 0.0
    %344 = vmatpush1.msra.mxu0 %v204
    %345 = vmatprep.subr.mxu0 0.0
    %346 = vmatpush1.msra.mxu0 %v203
    %347 = vmatprep.subr.mxu0 0.0
    %348 = vmatpush1.msra.mxu0 %v202
    %349 = vmatprep.subr.mxu0 0.0
    %350 = vmatpush1.msra.mxu0 %v201
    %351 = vmatprep.subr.mxu0 0.0
    %352 = vmatpush1.msra.mxu0 %v200
    %353 = vmatprep.subr.mxu0 0.0
    %354 = vmatpush2.msra.mxu0 %v231
    %355 = vmatprep.subr.mxu0 0.0
    %356 = vmatpush2.msra.mxu0 %v230
    %357 = vmatprep.subr.mxu0 0.0
    %358 = vmatpush2.msra.mxu0 %v229
    %359 = vmatprep.subr.mxu0 0.0
    %360 = vmatpush2.msra.mxu0 %v228
    %361 = vmatprep.subr.mxu0 0.0
    %362 = vmatpush2.msra.mxu0 %v227
    %363 = vmatprep.subr.mxu0 0.0
    %364 = vmatpush2.msra.mxu0 %v226
    %365 = vmatprep.subr.mxu0 0.0
    %366 = vmatpush2.msra.mxu0 %v225
    %367 = vmatprep.subr.mxu0 0.0
    %368 = vmatpush2.msra.mxu0 %v224
    %369 = vmatprep.subr.mxu0 0.0
    %370 = vmatpush2.msra.mxu0 %v223
    %371 = vmatprep.subr.mxu0 0.0
    %372 = vmatpush2.msra.mxu0 %v222
    %373 = vmatprep.subr.mxu0 0.0
    %374 = vmatpush2.msra.mxu0 %v221
    %375 = vmatprep.subr.mxu0 0.0
    %376 = vmatpush2.msra.mxu0 %v220
    %377 = vmatprep.subr.mxu0 0.0
    %378 = vmatpush2.msra.mxu0 %v219
    %379 = vmatprep.subr.mxu0 0.0
    %380 = vmatpush2.msra.mxu0 %v218
    %381 = vmatprep.subr.mxu0 0.0
    %382 = vmatpush2.msra.mxu0 %v217
    %383 = vmatprep.subr.mxu0 0.0
    %384 = vmatpush2.msra.mxu0 %v216
    %385 = vmatprep.mubr.f32.mxu0 %v307
    %386 = vmatmul.mubr.f32.gmra.mxu0 %v100
    %v387 = vpop.f32.mrf.mxu0
    %v388 = vadd.f32 %v319, %v387
    %v389 = vpop.f32.mrf.mxu0
    %390 = vmatprep.mubr.f32.mxu0 %v312
    %391 = vmatmul.mubr.f32.gmra.mxu0 %v101
    %v392 = vpop.f32.mrf.mxu0
    %v393 = vadd.f32 %v319, %v392
    %v394 = vpop.f32.mrf.mxu0
    %395 = vdwg.mxu0
    %v396 = vmax.f32 %v388, 0.0
    %v397 = vmax.f32 %v393, 0.0
    %v398 = vld [vmem:[#allocation10 + $0x80] sm:$0xff]
    %v399 = vld [vmem:[#allocation10 + $0x88] sm:$0xff]
    %v400 = vld [vmem:[#allocation10 + $0x90] sm:$0xff]
    %v401 = vld [vmem:[#allocation10 + $0x98] sm:$0xff]
    %v402 = vld [vmem:[#allocation10 + $0xa0] sm:$0xff]
    %v403 = vld [vmem:[#allocation10 + $0xa8] sm:$0xff]
    %v404 = vld [vmem:[#allocation10 + $0xb0] sm:$0xff]
    %v405 = vld [vmem:[#allocation10 + $0xb8] sm:$0xff]
    %v406 = vld [vmem:[#allocation10 + $0xc0] sm:$0xff]
    %v407 = vld [vmem:[#allocation10 + $0xc8] sm:$0xff]
    %v408 = vld [vmem:[#allocation10 + $0xd0] sm:$0xff]
    %v409 = vld [vmem:[#allocation10 + $0xd8] sm:$0xff]
    %v410 = vld [vmem:[#allocation10 + $0xe0] sm:$0xff]
    %v411 = vld [vmem:[#allocation10 + $0xe8] sm:$0xff]
    %v412 = vld [vmem:[#allocation10 + $0xf0] sm:$0xff]
    %v413 = vld [vmem:[#allocation10 + $0xf8] sm:$0xff]
    %414 = vmatprep.subr.mxu0 0.0
    %415 = vmatpush1.msra.mxu0 %v413
    %416 = vmatprep.subr.mxu0 0.0
    %417 = vmatpush1.msra.mxu0 %v412
    %418 = vmatprep.subr.mxu0 0.0
    %419 = vmatpush1.msra.mxu0 %v411
    %420 = vmatprep.subr.mxu0 0.0
    %421 = vmatpush1.msra.mxu0 %v410
    %422 = vmatprep.subr.mxu0 0.0
    %423 = vmatpush1.msra.mxu0 %v409
    %424 = vmatprep.subr.mxu0 0.0
    %425 = vmatpush1.msra.mxu0 %v408
    %426 = vmatprep.subr.mxu0 0.0
    %427 = vmatpush1.msra.mxu0 %v407
    %428 = vmatprep.subr.mxu0 0.0
    %429 = vmatpush1.msra.mxu0 %v406
    %430 = vmatprep.subr.mxu0 0.0
    %431 = vmatpush1.msra.mxu0 %v405
    %432 = vmatprep.subr.mxu0 0.0
    %433 = vmatpush1.msra.mxu0 %v404
    %434 = vmatprep.subr.mxu0 0.0
    %435 = vmatpush1.msra.mxu0 %v403
    %436 = vmatprep.subr.mxu0 0.0
    %437 = vmatpush1.msra.mxu0 %v402
    %438 = vmatprep.subr.mxu0 0.0
    %439 = vmatpush1.msra.mxu0 %v401
    %440 = vmatprep.subr.mxu0 0.0
    %441 = vmatpush1.msra.mxu0 %v400
    %442 = vmatprep.subr.mxu0 0.0
    %443 = vmatpush1.msra.mxu0 %v399
    %444 = vmatprep.subr.mxu0 0.0
    %445 = vmatpush1.msra.mxu0 %v398
    %446 = vmatprep.subr.mxu0 0.0
    %447 = vmatpush2.msra.mxu0 0.0
    %448 = vmatprep.subr.mxu0 0.0
    %449 = vmatpush2.msra.mxu0 0.0
    %450 = vmatprep.subr.mxu0 0.0
    %451 = vmatpush2.msra.mxu0 0.0
    %452 = vmatprep.subr.mxu0 0.0
    %453 = vmatpush2.msra.mxu0 0.0
    %454 = vmatprep.subr.mxu0 0.0
    %455 = vmatpush2.msra.mxu0 0.0
    %456 = vmatprep.subr.mxu0 0.0
    %457 = vmatpush2.msra.mxu0 0.0
    %458 = vmatprep.subr.mxu0 0.0
    %459 = vmatpush2.msra.mxu0 0.0
    %460 = vmatprep.subr.mxu0 0.0
    %461 = vmatpush2.msra.mxu0 0.0
    %462 = vmatprep.subr.mxu0 0.0
    %463 = vmatpush2.msra.mxu0 0.0
    %464 = vmatprep.subr.mxu0 0.0
    %465 = vmatpush2.msra.mxu0 0.0
    %466 = vmatprep.subr.mxu0 0.0
    %467 = vmatpush2.msra.mxu0 0.0
    %468 = vmatprep.subr.mxu0 0.0
    %469 = vmatpush2.msra.mxu0 0.0
    %470 = vmatprep.subr.mxu0 0.0
    %471 = vmatpush2.msra.mxu0 0.0
    %472 = vmatprep.subr.mxu0 0.0
    %473 = vmatpush2.msra.mxu0 0.0
    %474 = vmatprep.subr.mxu0 0.0
    %475 = vmatpush2.msra.mxu0 0.0
    %476 = vmatprep.subr.mxu0 0.0
    %477 = vmatpush2.msra.mxu0 0.0
    %478 = vmatprep.mubr.f32.mxu0 0.0
    %479 = vmatmul.mubr.f32.gmra.mxu0 %v396
    %v480 = vpop.f32.mrf.mxu0
    %v481 = vadd.f32 0.0, %v480
    %v482 = vpop.f32.mrf.mxu0
    %483 = vmatprep.mubr.f32.mxu0 0.0
    %484 = vmatmul.mubr.f32.gmra.mxu0 %v397
    %v485 = vpop.f32.mrf.mxu0
    %v486 = vadd.f32 0.0, %v485
    %v487 = vpop.f32.mrf.mxu0
    %488 = vdwg.mxu0
    %v489 = vadd.f32 %v192, %v481
    %v490 = vadd.f32 %v197, %v486
    %v491 = vld [vmem:[#allocation8] sm:$0xff]
    %v492 = vld [vmem:[#allocation8 + $0x8] sm:$0xff]
    %v493 = vld [vmem:[#allocation8 + $0x10] sm:$0xff]
    %v494 = vld [vmem:[#allocation8 + $0x18] sm:$0xff]
    %v495 = vld [vmem:[#allocation8 + $0x20] sm:$0xff]
    %v496 = vld [vmem:[#allocation8 + $0x28] sm:$0xff]
    %v497 = vld [vmem:[#allocation8 + $0x30] sm:$0xff]
    %v498 = vld [vmem:[#allocation8 + $0x38] sm:$0xff]
    %v499 = vld [vmem:[#allocation8 + $0x40] sm:$0xff]
    %v500 = vld [vmem:[#allocation8 + $0x48] sm:$0xff]
    %v501 = vld [vmem:[#allocation8 + $0x50] sm:$0xff]
    %v502 = vld [vmem:[#allocation8 + $0x58] sm:$0xff]
    %v503 = vld [vmem:[#allocation8 + $0x60] sm:$0xff]
    %v504 = vld [vmem:[#allocation8 + $0x68] sm:$0xff]
    %v505 = vld [vmem:[#allocation8 + $0x70] sm:$0xff]
    %v506 = vld [vmem:[#allocation8 + $0x78] sm:$0xff]
    %v507 = vld [vmem:[#allocation8 + $0x80] sm:$0xff]
    %v508 = vld [vmem:[#allocation8 + $0x88] sm:$0xff]
    %v509 = vld [vmem:[#allocation8 + $0x90] sm:$0xff]
    %v510 = vld [vmem:[#allocation8 + $0x98] sm:$0xff]
    %v511 = vld [vmem:[#allocation8 + $0xa0] sm:$0xff]
    %v512 = vld [vmem:[#allocation8 + $0xa8] sm:$0xff]
    %v513 = vld [vmem:[#allocation8 + $0xb0] sm:$0xff]
    %v514 = vld [vmem:[#allocation8 + $0xb8] sm:$0xff]
    %v515 = vld [vmem:[#allocation8 + $0xc0] sm:$0xff]
    %v516 = vld [vmem:[#allocation8 + $0xc8] sm:$0xff]
    %v517 = vld [vmem:[#allocation8 + $0xd0] sm:$0xff]
    %v518 = vld [vmem:[#allocation8 + $0xd8] sm:$0xff]
    %v519 = vld [vmem:[#allocation8 + $0xe0] sm:$0xff]
    %v520 = vld [vmem:[#allocation8 + $0xe8] sm:$0xff]
    %v521 = vld [vmem:[#allocation8 + $0xf0] sm:$0xff]
    %v522 = vld [vmem:[#allocation8 + $0xf8] sm:$0xff]
    %v523 = vld [vmem:[%s5] sm:$0x1]
    %524 = vmatprep.subr.mxu0 0.0
    %525 = vmatpush1.msra.mxu0 0.0
    %526 = vmatprep.subr.mxu0 0.0
    %527 = vmatpush1.msra.mxu0 0.0
    %528 = vmatprep.subr.mxu0 0.0
    %529 = vmatpush1.msra.mxu0 0.0
    %530 = vmatprep.subr.mxu0 0.0
    %531 = vmatpush1.msra.mxu0 0.0
    %532 = vmatprep.subr.mxu0 0.0
    %533 = vmatpush1.msra.mxu0 0.0
    %534 = vmatprep.subr.mxu0 0.0
    %535 = vmatpush1.msra.mxu0 0.0
    %536 = vmatprep.subr.mxu0 0.0
    %537 = vmatpush1.msra.mxu0 0.0
    %538 = vmatprep.subr.mxu0 0.0
    %539 = vmatpush1.msra.mxu0 0.0
    %540 = vmatprep.subr.mxu0 0.0
    %541 = vmatpush1.msra.mxu0 0.0
    %542 = vmatprep.subr.mxu0 0.0
    %543 = vmatpush1.msra.mxu0 0.0
    %544 = vmatprep.subr.mxu0 0.0
    %545 = vmatpush1.msra.mxu0 0.0
    %546 = vmatprep.subr.mxu0 0.0
    %547 = vmatpush1.msra.mxu0 0.0
    %548 = vmatprep.subr.mxu0 0.0
    %549 = vmatpush1.msra.mxu0 0.0
    %550 = vmatprep.subr.mxu0 0.0
    %551 = vmatpush1.msra.mxu0 0.0
    %552 = vmatprep.subr.mxu0 0.0
    %553 = vmatpush1.msra.mxu0 %v397
    %554 = vmatprep.subr.mxu0 0.0
    %555 = vmatpush1.msra.mxu0 %v396
    %556 = vmatprep.subr.mxu0 0.0
    %557 = vmatpush2.msra.mxu0 0.0
    %558 = vmatprep.subr.mxu0 0.0
    %559 = vmatpush2.msra.mxu0 0.0
    %560 = vmatprep.subr.mxu0 0.0
    %561 = vmatpush2.msra.mxu0 0.0
    %562 = vmatprep.subr.mxu0 0.0
    %563 = vmatpush2.msra.mxu0 0.0
    %564 = vmatprep.subr.mxu0 0.0
    %565 = vmatpush2.msra.mxu0 0.0
    %566 = vmatprep.subr.mxu0 0.0
    %567 = vmatpush2.msra.mxu0 0.0
    %568 = vmatprep.subr.mxu0 0.0
    %569 = vmatpush2.msra.mxu0 0.0
    %570 = vmatprep.subr.mxu0 0.0
    %571 = vmatpush2.msra.mxu0 0.0
    %572 = vmatprep.subr.mxu0 0.0
    %573 = vmatpush2.msra.mxu0 0.0
    %574 = vmatprep.subr.mxu0 0.0
    %575 = vmatpush2.msra.mxu0 0.0
    %576 = vmatprep.subr.mxu0 0.0
    %577 = vmatpush2.msra.mxu0 0.0
    %578 = vmatprep.subr.mxu0 0.0
    %579 = vmatpush2.msra.mxu0 0.0
    %580 = vmatprep.subr.mxu0 0.0
    %581 = vmatpush2.msra.mxu0 0.0
    %582 = vmatprep.subr.mxu0 0.0
    %583 = vmatpush2.msra.mxu0 0.0
    %584 = vmatprep.subr.mxu0 0.0
    %585 = vmatpush2.msra.mxu0 0.0
    %586 = vmatprep.subr.mxu0 0.0
    %587 = vmatpush2.msra.mxu0 0.0
    %588 = vmatprep.mubr.f32.mxu0 0.0
    %589 = vmatmul.mubr.f32.gmra.mxu0 %v235
    %v590 = vpop.f32.mrf.mxu0
    %v591 = vadd.f32 0.0, %v590
    %v592 = vpop.f32.mrf.mxu0
    %593 = vmatprep.mubr.f32.mxu0 0.0
    %594 = vmatmul.mubr.f32.gmra.mxu0 %v238
    %v595 = vpop.f32.mrf.mxu0
    %v596 = vadd.f32 0.0, %v595
    %v597 = vpop.f32.mrf.mxu0
    %598 = vdwg.mxu0
    %v600 = vlaneseq
    %v601 = vshrl.u32 %v600, 7
    %v602 = vsub.s32 0, %v601
    %v603 = vrot.slane %v523, %v602
    %605 = vmatprep.subr.mxu0 0.0
    %606 = vmatpush1.msra.mxu0 %v506
    %607 = vmatprep.subr.mxu0 0.0
    %608 = vmatpush1.msra.mxu0 %v505
    %609 = vmatprep.subr.mxu0 0.0
    %610 = vmatpush1.msra.mxu0 %v504
    %611 = vmatprep.subr.mxu0 0.0
    %612 = vmatpush1.msra.mxu0 %v503
    %613 = vmatprep.subr.mxu0 0.0
    %614 = vmatpush1.msra.mxu0 %v502
    %615 = vmatprep.subr.mxu0 0.0
    %616 = vmatpush1.msra.mxu0 %v501
    %617 = vmatprep.subr.mxu0 0.0
    %618 = vmatpush1.msra.mxu0 %v500
    %619 = vmatprep.subr.mxu0 0.0
    %620 = vmatpush1.msra.mxu0 %v499
    %621 = vmatprep.subr.mxu0 0.0
    %622 = vmatpush1.msra.mxu0 %v498
    %623 = vmatprep.subr.mxu0 0.0
    %624 = vmatpush1.msra.mxu0 %v497
    %625 = vmatprep.subr.mxu0 0.0
    %626 = vmatpush1.msra.mxu0 %v496
    %627 = vmatprep.subr.mxu0 0.0
    %628 = vmatpush1.msra.mxu0 %v495
    %629 = vmatprep.subr.mxu0 0.0
    %630 = vmatpush1.msra.mxu0 %v494
    %631 = vmatprep.subr.mxu0 0.0
    %632 = vmatpush1.msra.mxu0 %v493
    %633 = vmatprep.subr.mxu0 0.0
    %634 = vmatpush1.msra.mxu0 %v492
    %635 = vmatprep.subr.mxu0 0.0
    %636 = vmatpush1.msra.mxu0 %v491
    %637 = vmatprep.subr.mxu0 0.0
    %638 = vmatpush2.msra.mxu0 %v522
    %639 = vmatprep.subr.mxu0 0.0
    %640 = vmatpush2.msra.mxu0 %v521
    %641 = vmatprep.subr.mxu0 0.0
    %642 = vmatpush2.msra.mxu0 %v520
    %643 = vmatprep.subr.mxu0 0.0
    %644 = vmatpush2.msra.mxu0 %v519
    %645 = vmatprep.subr.mxu0 0.0
    %646 = vmatpush2.msra.mxu0 %v518
    %647 = vmatprep.subr.mxu0 0.0
    %648 = vmatpush2.msra.mxu0 %v517
    %649 = vmatprep.subr.mxu0 0.0
    %650 = vmatpush2.msra.mxu0 %v516
    %651 = vmatprep.subr.mxu0 0.0
    %652 = vmatpush2.msra.mxu0 %v515
    %653 = vmatprep.subr.mxu0 0.0
    %654 = vmatpush2.msra.mxu0 %v514
    %655 = vmatprep.subr.mxu0 0.0
    %656 = vmatpush2.msra.mxu0 %v513
    %657 = vmatprep.subr.mxu0 0.0
    %658 = vmatpush2.msra.mxu0 %v512
    %659 = vmatprep.subr.mxu0 0.0
    %660 = vmatpush2.msra.mxu0 %v511
    %661 = vmatprep.subr.mxu0 0.0
    %662 = vmatpush2.msra.mxu0 %v510
    %663 = vmatprep.subr.mxu0 0.0
    %664 = vmatpush2.msra.mxu0 %v509
    %665 = vmatprep.subr.mxu0 0.0
    %666 = vmatpush2.msra.mxu0 %v508
    %667 = vmatprep.subr.mxu0 0.0
    %668 = vmatpush2.msra.mxu0 %v507
    %669 = vmatprep.mubr.f32.mxu0 %v591
    %670 = vmatmul.mubr.f32.gmra.mxu0 %v396
    %v671 = vpop.f32.mrf.mxu0
    %v672 = vadd.f32 %v603, %v671
    %v673 = vpop.f32.mrf.mxu0
    %674 = vmatprep.mubr.f32.mxu0 %v596
    %675 = vmatmul.mubr.f32.gmra.mxu0 %v397
    %v676 = vpop.f32.mrf.mxu0
    %v677 = vadd.f32 %v603, %v676
    %v678 = vpop.f32.mrf.mxu0
    %679 = vdwg.mxu0
    %v680 = vmax.f32 %v672, 0.0
    %v681 = vmax.f32 %v677, 0.0
    %v682 = vld [vmem:[#allocation10 + $0x100] sm:$0xff]
    %v683 = vld [vmem:[#allocation10 + $0x108] sm:$0xff]
    %v684 = vld [vmem:[#allocation10 + $0x110] sm:$0xff]
    %v685 = vld [vmem:[#allocation10 + $0x118] sm:$0xff]
    %v686 = vld [vmem:[#allocation10 + $0x120] sm:$0xff]
    %v687 = vld [vmem:[#allocation10 + $0x128] sm:$0xff]
    %v688 = vld [vmem:[#allocation10 + $0x130] sm:$0xff]
    %v689 = vld [vmem:[#allocation10 + $0x138] sm:$0xff]
    %v690 = vld [vmem:[#allocation10 + $0x140] sm:$0xff]
    %v691 = vld [vmem:[#allocation10 + $0x148] sm:$0xff]
    %v692 = vld [vmem:[#allocation10 + $0x150] sm:$0xff]
    %v693 = vld [vmem:[#allocation10 + $0x158] sm:$0xff]
    %v694 = vld [vmem:[#allocation10 + $0x160] sm:$0xff]
    %v695 = vld [vmem:[#allocation10 + $0x168] sm:$0xff]
    %v696 = vld [vmem:[#allocation10 + $0x170] sm:$0xff]
    %v697 = vld [vmem:[#allocation10 + $0x178] sm:$0xff]
    %698 = vmatprep.subr.mxu0 0.0
    %699 = vmatpush1.msra.mxu0 %v697
    %700 = vmatprep.subr.mxu0 0.0
    %701 = vmatpush1.msra.mxu0 %v696
    %702 = vmatprep.subr.mxu0 0.0
    %703 = vmatpush1.msra.mxu0 %v695
    %704 = vmatprep.subr.mxu0 0.0
    %705 = vmatpush1.msra.mxu0 %v694
    %706 = vmatprep.subr.mxu0 0.0
    %707 = vmatpush1.msra.mxu0 %v693
    %708 = vmatprep.subr.mxu0 0.0
    %709 = vmatpush1.msra.mxu0 %v692
    %710 = vmatprep.subr.mxu0 0.0
    %711 = vmatpush1.msra.mxu0 %v691
    %712 = vmatprep.subr.mxu0 0.0
    %713 = vmatpush1.msra.mxu0 %v690
    %714 = vmatprep.subr.mxu0 0.0
    %715 = vmatpush1.msra.mxu0 %v689
    %716 = vmatprep.subr.mxu0 0.0
    %717 = vmatpush1.msra.mxu0 %v688
    %718 = vmatprep.subr.mxu0 0.0
    %719 = vmatpush1.msra.mxu0 %v687
    %720 = vmatprep.subr.mxu0 0.0
    %721 = vmatpush1.msra.mxu0 %v686
    %722 = vmatprep.subr.mxu0 0.0
    %723 = vmatpush1.msra.mxu0 %v685
    %724 = vmatprep.subr.mxu0 0.0
    %725 = vmatpush1.msra.mxu0 %v684
    %726 = vmatprep.subr.mxu0 0.0
    %727 = vmatpush1.msra.mxu0 %v683
    %728 = vmatprep.subr.mxu0 0.0
    %729 = vmatpush1.msra.mxu0 %v682
    %730 = vmatprep.subr.mxu0 0.0
    %731 = vmatpush2.msra.mxu0 0.0
    %732 = vmatprep.subr.mxu0 0.0
    %733 = vmatpush2.msra.mxu0 0.0
    %734 = vmatprep.subr.mxu0 0.0
    %735 = vmatpush2.msra.mxu0 0.0
    %736 = vmatprep.subr.mxu0 0.0
    %737 = vmatpush2.msra.mxu0 0.0
    %738 = vmatprep.subr.mxu0 0.0
    %739 = vmatpush2.msra.mxu0 0.0
    %740 = vmatprep.subr.mxu0 0.0
    %741 = vmatpush2.msra.mxu0 0.0
    %742 = vmatprep.subr.mxu0 0.0
    %743 = vmatpush2.msra.mxu0 0.0
    %744 = vmatprep.subr.mxu0 0.0
    %745 = vmatpush2.msra.mxu0 0.0
    %746 = vmatprep.subr.mxu0 0.0
    %747 = vmatpush2.msra.mxu0 0.0
    %748 = vmatprep.subr.mxu0 0.0
    %749 = vmatpush2.msra.mxu0 0.0
    %750 = vmatprep.subr.mxu0 0.0
    %751 = vmatpush2.msra.mxu0 0.0
    %752 = vmatprep.subr.mxu0 0.0
    %753 = vmatpush2.msra.mxu0 0.0
    %754 = vmatprep.subr.mxu0 0.0
    %755 = vmatpush2.msra.mxu0 0.0
    %756 = vmatprep.subr.mxu0 0.0
    %757 = vmatpush2.msra.mxu0 0.0
    %758 = vmatprep.subr.mxu0 0.0
    %759 = vmatpush2.msra.mxu0 0.0
    %760 = vmatprep.subr.mxu0 0.0
    %761 = vmatpush2.msra.mxu0 0.0
    %762 = vmatprep.mubr.f32.mxu0 0.0
    %763 = vmatmul.mubr.f32.gmra.mxu0 %v680
    %v764 = vpop.f32.mrf.mxu0
    %v765 = vadd.f32 0.0, %v764
    %v766 = vpop.f32.mrf.mxu0
    %767 = vmatprep.mubr.f32.mxu0 0.0
    %768 = vmatmul.mubr.f32.gmra.mxu0 %v681
    %v769 = vpop.f32.mrf.mxu0
    %v770 = vadd.f32 0.0, %v769
    %v771 = vpop.f32.mrf.mxu0
    %772 = vdwg.mxu0
    %v773 = vadd.f32 %v489, %v765
    %v774 = vadd.f32 %v490, %v770
    %775 = vst [vmem:[#allocation11] sm:$0xff] %v773
    %776 = vst [vmem:[#allocation11 + $0x8] sm:$0xff] %v774
    // Predicated region
    $region54: #{tpu_custom_call.1} parent=1 // pred_check
      _
    $region55: #{tpu_custom_call.1} parent=1 // pred_check_branch
      %778 = sbr.rel (0) target = $region57
    $region56: #{tpu_custom_call.1} parent=1 // pred_region
      %s780 = ssub.s32 256, 256
      %781 = vsyncadd [#allocation4], %s780
      %s782 = sshll.u32 [#allocation11], 4
      %s783 = int_to_ptr.vmem [resolvable:$true] %s782
      %788 = dma.vmem_to_hbm [thread:$0]  %s783, 256, %s8, [#allocation4], 128, 128, 8
    $region57: #{tpu_custom_call.1} parent=1 // pred_fallthru
      _
    // Predicated region
    $region58: #{tpu_custom_call.1} parent=1 // pred_check
      _
    $region59: #{tpu_custom_call.1} parent=1 // pred_check_branch
      %790 = sbr.rel (0) target = $region61
    $region60: #{tpu_custom_call.1} parent=1 // pred_region
      %791 = dma.done [#allocation4], 256
    $region61: #{tpu_custom_call.1} parent=1 // pred_fallthru
      _
    %792 = vsyncpa [#allocation3], 1
    %793 = vsyncpa [#allocation6], 1
    %794 = vsyncpa [#allocation9], 1
    %795 = vsyncpa [#allocation4], 1

</llo_original>
